<compile_context>
chip_gen: v7x
topology: tpu7x:2x2x1
jax: 0.10.0
libtpu: 0.0.40
codegen_flags: <defaults>
</compile_context>

<pallas_src>
import jax
import jax.numpy as jnp
from jax.experimental import pallas as pl
from jax.experimental.pallas import tpu as pltpu


def _leaky_relu(x, slope=0.2):
    return jnp.where(x > 0, x, slope * x)


def disc_kernel(x_ref, w1t_ref, b1_ref, w2t_ref, b2_ref, w34_ref, b34_ref, o_ref):
    # x_ref: (TB, 56) batch tile, batch on sublanes / features on lanes.
    # Layers 1-2 keep that orientation (x @ W^T with pre-transposed weights), so
    # the contraction dim is already on x's lanes and the weights' sublanes ->
    # no in-kernel transpose of the big streamed operand.
    x = x_ref[...].astype(jnp.float32)                                    # (TB, 56)

    h = jnp.dot(x, w1t_ref[...], preferred_element_type=jnp.float32)     # (TB, 32)
    h = _leaky_relu(h + b1_ref[...])

    h = jnp.dot(h, w2t_ref[...], preferred_element_type=jnp.float32)     # (TB, 16)
    h = _leaky_relu(h + b2_ref[...])

    # Folded layer3+layer4: contract the 16-wide activation against (1, 16).
    # Only this small tensor gets relayouted (batch moves sublanes -> lanes),
    # giving a lane-dense (1, TB) output block (unmasked stores, dense DMA).
    o = jnp.einsum("oi,bi->ob", w34_ref[...], h,
                   preferred_element_type=jnp.float32)                   # (1, TB)
    o_ref[...] = (o + b34_ref[...]).astype(o_ref.dtype)


def _round_up(n, m):
    return ((n + m - 1) // m) * m


def discriminator_forward(img, params, *, tile_b=8192):
    """img: (B, C, H, W) with C*H*W == 56. Returns (B, 1) float32.

    params are in PyTorch nn.Linear layout: weights (out, in), biases (out,).
    """
    B = img.shape[0]
    x = img.reshape(B, -1)
    assert x.shape[1] == 56, f"expected 56 flattened features, got {x.shape[1]}"
    if not jnp.issubdtype(x.dtype, jnp.floating):
        x = x.astype(jnp.float32)   # ints etc.; floats (f32/bf16) DMA'd as-is

    w1, b1, w2, b2, w3, b3, w4, b4 = params

    # Fold Linear(16->8) and Linear(8->1): no activation between them.
    w34 = jnp.dot(w4, w3, precision=jax.lax.Precision.HIGHEST)       # (1, 16)
    b34 = jnp.dot(w4, b3, precision=jax.lax.Precision.HIGHEST) + b4  # (1,)

    # Batch tile: lane-aligned (multiple of 128); aim for ~8 grid steps
    # (>= 4 per TensorCore on v7x) and cap at tile_b.  VMEM budget must use the
    # lane-padded footprint: the double-buffered x tile costs 2 * TB * 128 * 4 B.
    TB = min(tile_b, max(128, _round_up(pl.cdiv(B, 8), 128)))
    grid = (pl.cdiv(B, TB),)   # partial last block: reads padded, writes masked

    in_specs = [
        pl.BlockSpec((TB, 56), lambda i: (i, 0)),        # streamed batch tile of x
        pl.BlockSpec((56, 32), lambda i: (0, 0)),        # w1.T  (VMEM-resident)
        pl.BlockSpec((1, 32), lambda i: (0, 0)),         # b1
        pl.BlockSpec((32, 16), lambda i: (0, 0)),        # w2.T
        pl.BlockSpec((1, 16), lambda i: (0, 0)),         # b2
        pl.BlockSpec((1, 16), lambda i: (0, 0)),         # w34
        pl.BlockSpec((1, 1), lambda i: (0, 0)),          # b34
    ]

    flops = 2 * B * (56 * 32 + 32 * 16 + 16)
    param_bytes = 4 * (56 * 32 + 32 + 32 * 16 + 16 + 16 + 1)
    bytes_accessed = B * 56 * x.dtype.itemsize + B * 4 + param_bytes

    out = pl.pallas_call(
        disc_kernel,
        out_shape=jax.ShapeDtypeStruct((1, B), jnp.float32),
        grid=grid,
        in_specs=in_specs,
        out_specs=pl.BlockSpec((1, TB), lambda i: (0, i)),
        compiler_params=pltpu.CompilerParams(
            dimension_semantics=("parallel",),
            vmem_limit_bytes=48 * 1024 * 1024),
        cost_estimate=pl.CostEstimate(
            flops=flops, transcendentals=0, bytes_accessed=bytes_accessed),
    )(
        x,
        w1.T, b1.reshape(1, -1),
        w2.T, b2.reshape(1, -1),
        w34, b34.reshape(1, 1),
    )

    # (1, B) row-major has the same element order as (B, 1).
    return out.reshape(B, 1)


def init_params(key):
    """Deterministic init matching PyTorch nn.Linear layout: W (out, in), b (out,)."""
    dims = [(56, 32), (32, 16), (16, 8), (8, 1)]
    params = []
    for i, (din, dout) in enumerate(dims):
        kw, kb = jax.random.split(jax.random.fold_in(key, i))
        bound = 1.0 / (din ** 0.5)          # same scale as PyTorch default init
        w = jax.random.uniform(kw, (dout, din), jnp.float32, -bound, bound)
        b = jax.random.uniform(kb, (dout,), jnp.float32, -bound, bound)
        params += [w, b]
    return tuple(params)


def reference_forward(img, params):
    """Pure-JAX reference (unfolded, un-tiled) for correctness checking."""
    B = img.shape[0]
    x = img.reshape(B, -1).astype(jnp.float32)
    w1, b1, w2, b2, w3, b3, w4, b4 = params
    h = _leaky_relu(x @ w1.T + b1)
    h = _leaky_relu(h @ w2.T + b2)
    h = h @ w3.T + b3
    h = h @ w4.T + b4
    return h


if __name__ == "__main__":
    key = jax.random.PRNGKey(0)
    k_img, k_img2, k_params = jax.random.split(key, 3)
    params = init_params(k_params)

    # Tolerance covers MXU default (bf16-pass) matmul precision differences
    # between the Mosaic kernel and the XLA reference plus the exact layer-3/4
    # fold; outputs are O(0.1) so this is a few-percent check, not bit parity.
    ATOL = RTOL = 2e-3

    # Small NCHW input whose flattened feature size is 56: (B=2, C=1, H=7, W=8).
    img = jax.random.normal(k_img, (2, 1, 7, 8), dtype=jnp.float32)
    out = jax.block_until_ready(discriminator_forward(img, params))
    ref = reference_forward(img, params)
    assert out.shape == (2, 1), out.shape
    assert jnp.allclose(out, ref, atol=ATOL, rtol=RTOL), (out, ref)

    # Also exercise a multi-step grid with a partial last block (pad-free path).
    img2 = jax.random.normal(k_img2, (300, 1, 7, 8), dtype=jnp.float32)
    out2 = jax.block_until_ready(discriminator_forward(img2, params))
    ref2 = reference_forward(img2, params)
    assert out2.shape == (300, 1), out2.shape
    assert jnp.allclose(out2, ref2, atol=ATOL, rtol=RTOL), float(
        jnp.max(jnp.abs(out2 - ref2)))

    print("KERNEL_OK")
</pallas_src>

<mosaic_0001>
module attributes {stable_mosaic.version = 11 : i64} {
  func.func @disc_kernel(%arg0: i32, %arg1: memref<128x56xf32, #tpu.memory_space<vmem>>, %arg2: memref<56x32xf32, #tpu.memory_space<vmem>>, %arg3: memref<1x32xf32, #tpu.memory_space<vmem>>, %arg4: memref<32x16xf32, #tpu.memory_space<vmem>>, %arg5: memref<1x16xf32, #tpu.memory_space<vmem>>, %arg6: memref<1x16xf32, #tpu.memory_space<vmem>>, %arg7: memref<1x1xf32, #tpu.memory_space<vmem>>, %arg8: memref<1x128xf32, #tpu.memory_space<vmem>>) attributes {dimension_semantics = [#tpu.dimension_semantics<parallel>], iteration_bounds = array<i64: 1>, scalar_prefetch = 0 : i64, scratch_operands = 0 : i64, tpu.core_type = #tpu.core_type<tc>, window_params = [{transform_indices = @transform_0, window_bounds = array<i64: 128, 56>}, {pipeline_mode = #tpu.pipeline_mode<synchronous>, transform_indices = @transform_1, window_bounds = array<i64: 56, 32>}, {pipeline_mode = #tpu.pipeline_mode<synchronous>, transform_indices = @transform_2, window_bounds = array<i64: 1, 32>}, {pipeline_mode = #tpu.pipeline_mode<synchronous>, transform_indices = @transform_3, window_bounds = array<i64: 32, 16>}, {pipeline_mode = #tpu.pipeline_mode<synchronous>, transform_indices = @transform_4, window_bounds = array<i64: 1, 16>}, {pipeline_mode = #tpu.pipeline_mode<synchronous>, transform_indices = @transform_5, window_bounds = array<i64: 1, 16>}, {pipeline_mode = #tpu.pipeline_mode<synchronous>, transform_indices = @transform_6, window_bounds = array<i64: 1, 1>}, {transform_indices = @transform_7, window_bounds = array<i64: 1, 128>}]} {
    %c0 = arith.constant 0 : index
    %c0_0 = arith.constant 0 : index
    %0 = vector.load %arg1[%c0, %c0_0] : memref<128x56xf32, #tpu.memory_space<vmem>>, vector<128x56xf32>
    %c0_1 = arith.constant 0 : index
    %c0_2 = arith.constant 0 : index
    %1 = vector.load %arg2[%c0_1, %c0_2] : memref<56x32xf32, #tpu.memory_space<vmem>>, vector<56x32xf32>
    %cst = arith.constant dense<0.000000e+00> : vector<128x32xf32>
    %2 = tpu.matmul %0, %1, %cst {dimension_numbers = #tpu.dot_dimension_numbers<[1], [0], [0], [1], [0, 0, 1, 1], [], []>} : vector<128x56xf32>, vector<56x32xf32>, vector<128x32xf32> -> vector<128x32xf32>
    %c0_3 = arith.constant 0 : index
    %c0_4 = arith.constant 0 : index
    %3 = vector.load %arg3[%c0_3, %c0_4] : memref<1x32xf32, #tpu.memory_space<vmem>>, vector<1x32xf32>
    %4 = vector.broadcast %3 : vector<1x32xf32> to vector<128x32xf32>
    %5 = arith.addf %2, %4 : vector<128x32xf32>
    %cst_5 = arith.constant 0.000000e+00 : f32
    %6 = vector.broadcast %cst_5 : f32 to vector<128x32xf32>
    %7 = arith.cmpf ogt, %5, %6 : vector<128x32xf32>
    %cst_6 = arith.constant 2.000000e-01 : f32
    %8 = vector.broadcast %cst_6 : f32 to vector<128x32xf32>
    %9 = arith.mulf %8, %5 : vector<128x32xf32>
    %10 = arith.select %7, %5, %9 : vector<128x32xi1>, vector<128x32xf32>
    %c0_7 = arith.constant 0 : index
    %c0_8 = arith.constant 0 : index
    %11 = vector.load %arg4[%c0_7, %c0_8] : memref<32x16xf32, #tpu.memory_space<vmem>>, vector<32x16xf32>
    %cst_9 = arith.constant dense<0.000000e+00> : vector<128x16xf32>
    %12 = tpu.matmul %10, %11, %cst_9 {dimension_numbers = #tpu.dot_dimension_numbers<[1], [0], [0], [1], [0, 0, 1, 1], [], []>} : vector<128x32xf32>, vector<32x16xf32>, vector<128x16xf32> -> vector<128x16xf32>
    %c0_10 = arith.constant 0 : index
    %c0_11 = arith.constant 0 : index
    %13 = vector.load %arg5[%c0_10, %c0_11] : memref<1x16xf32, #tpu.memory_space<vmem>>, vector<1x16xf32>
    %14 = vector.broadcast %13 : vector<1x16xf32> to vector<128x16xf32>
    %15 = arith.addf %12, %14 : vector<128x16xf32>
    %cst_12 = arith.constant 0.000000e+00 : f32
    %16 = vector.broadcast %cst_12 : f32 to vector<128x16xf32>
    %17 = arith.cmpf ogt, %15, %16 : vector<128x16xf32>
    %cst_13 = arith.constant 2.000000e-01 : f32
    %18 = vector.broadcast %cst_13 : f32 to vector<128x16xf32>
    %19 = arith.mulf %18, %15 : vector<128x16xf32>
    %20 = arith.select %17, %15, %19 : vector<128x16xi1>, vector<128x16xf32>
    %c0_14 = arith.constant 0 : index
    %c0_15 = arith.constant 0 : index
    %21 = vector.load %arg6[%c0_14, %c0_15] : memref<1x16xf32, #tpu.memory_space<vmem>>, vector<1x16xf32>
    "tpu.trace_start"() <{level = 10 : i32, message = "oi,bi->ob"}> : () -> ()
    %cst_16 = arith.constant dense<0.000000e+00> : vector<1x128xf32>
    %22 = tpu.matmul %21, %20, %cst_16 {dimension_numbers = #tpu.dot_dimension_numbers<[1], [1], [0], [0], [0, 0, 1, 0], [], []>} : vector<1x16xf32>, vector<128x16xf32>, vector<1x128xf32> -> vector<1x128xf32>
    "tpu.trace_stop"() : () -> ()
    %c0_17 = arith.constant 0 : index
    %c0_18 = arith.constant 0 : index
    %23 = vector.load %arg7[%c0_17, %c0_18] : memref<1x1xf32, #tpu.memory_space<vmem>>, vector<1x1xf32>
    %24 = vector.broadcast %23 : vector<1x1xf32> to vector<1x128xf32>
    %25 = arith.addf %22, %24 : vector<1x128xf32>
    %c0_19 = arith.constant 0 : index
    %c0_20 = arith.constant 0 : index
    %26 = vector.load %arg8[%c0_19, %c0_20] : memref<1x128xf32, #tpu.memory_space<vmem>>, vector<1x128xf32>
    tpu.vector_store %arg8[%c0_19, %c0_20], %25 {strides = array<i32>} : memref<1x128xf32, #tpu.memory_space<vmem>>, vector<1x128xf32>,
    return
  }
  func.func @transform_0(%arg0: i32) -> (i32, i32) {
    %c0_i32 = arith.constant 0 : i32
    %c0_i32_0 = arith.constant 0 : i32
    return %arg0, %c0_i32 : i32, i32
  }
  func.func @transform_1(%arg0: i32) -> (i32, i32) {
    %c0_i32 = arith.constant 0 : i32
    %c0_i32_0 = arith.constant 0 : i32
    %c0_i32_1 = arith.constant 0 : i32
    return %c0_i32, %c0_i32_0 : i32, i32
  }
  func.func @transform_2(%arg0: i32) -> (i32, i32) {
    %c0_i32 = arith.constant 0 : i32
    %c0_i32_0 = arith.constant 0 : i32
    %c0_i32_1 = arith.constant 0 : i32
    return %c0_i32, %c0_i32_0 : i32, i32
  }
  func.func @transform_3(%arg0: i32) -> (i32, i32) {
    %c0_i32 = arith.constant 0 : i32
    %c0_i32_0 = arith.constant 0 : i32
    %c0_i32_1 = arith.constant 0 : i32
    return %c0_i32, %c0_i32_0 : i32, i32
  }
  func.func @transform_4(%arg0: i32) -> (i32, i32) {
    %c0_i32 = arith.constant 0 : i32
    %c0_i32_0 = arith.constant 0 : i32
    %c0_i32_1 = arith.constant 0 : i32
    return %c0_i32, %c0_i32_0 : i32, i32
  }
  func.func @transform_5(%arg0: i32) -> (i32, i32) {
    %c0_i32 = arith.constant 0 : i32
    %c0_i32_0 = arith.constant 0 : i32
    %c0_i32_1 = arith.constant 0 : i32
    return %c0_i32, %c0_i32_0 : i32, i32
  }
  func.func @transform_6(%arg0: i32) -> (i32, i32) {
    %c0_i32 = arith.constant 0 : i32
    %c0_i32_0 = arith.constant 0 : i32
    %c0_i32_1 = arith.constant 0 : i32
    return %c0_i32, %c0_i32_0 : i32, i32
  }
  func.func @transform_7(%arg0: i32) -> (i32, i32) {
    %c0_i32 = arith.constant 0 : i32
    %c0_i32_0 = arith.constant 0 : i32
    return %c0_i32, %arg0 : i32, i32
  }
}

</mosaic_0001>

<llo_original>
// kernel: tpu_custom_call.1
$region0: #{tpu_custom_call.1}
  #allocation0 [shape = 'u32[]', space=smem, size = 0x4, offset = 0x4, fixed_abs, tag = 'smem constant byte address 0x4 - core index']
  #allocation1 [shape = 'u32[144,128]{1,0:T(1,128)}', space=vmem, size = 0x12000, scoped, tag = 'internal scratch']
  #allocation2 [shape = 'f32[1,1]{1,0:T(1,128)S(1)}', space=vmem, size = 0x200, scoped, tag = 'scoped memory for tpu_custom_call.1']
  %s0 = inlined_call_operand.vmem [shape: f32[2,56], index: 0, kind: input, shape index: {}]
  %s1 = inlined_call_operand.vmem [shape: f32[56,32], index: 1, kind: input, shape index: {}]
  %s2 = inlined_call_operand.vmem [shape: f32[1,32], index: 2, kind: input, shape index: {}]
  %s3 = inlined_call_operand.vmem [shape: f32[32,16], index: 3, kind: input, shape index: {}]
  %s4 = inlined_call_operand.vmem [shape: f32[1,16], index: 4, kind: input, shape index: {}]
  %s5 = inlined_call_operand.vmem [shape: f32[1,16], index: 5, kind: input, shape index: {}]
  %s6 = inlined_call_operand.<no memory space> [shape: f32[1,1], index: 6, kind: input, shape index: {}]
  %s7 = inlined_call_operand.hbm [shape: f32[1,2], index: 7, kind: output, shape index: {}]
  %s8 = sld [smem:[#allocation0]]
  $region38: #{tpu_custom_call.1} parent=0
    _
  %s10 = ssub.s32 1, %s8
  %s11 = scalar_select 0, %s10, %s8
  %v12 = vstv %s6
  %13 = vst [vmem:[#allocation2] sm:$0x1] %v12
  $region1: #{tpu_custom_call.1} parent=0
    #allocation3 [shape = 'u8[512]{0}', space=vmem, size = 0x400, scoped, tag = 'output window, operand 0, single buffered']
    #allocation4 [shape = 's32[1]{0}', space=sflag, size = 0x4, scoped, tag = 'scoped memory for tpu_custom_call.1']
    %14 = vsyncpa [#allocation4], 0
    // Predicated region
    $region2: #{tpu_custom_call.1} parent=1 // pred_check
      _
    $region3: #{tpu_custom_call.1} parent=1 // pred_check_branch
      %16 = sbr.rel (0) target = $region5
    $region4: #{tpu_custom_call.1} parent=1 // pred_region
      _
    $region5: #{tpu_custom_call.1} parent=1 // pred_fallthru
      _
    // Predicated region
    $region6: #{tpu_custom_call.1} parent=1 // pred_check
      _
    $region7: #{tpu_custom_call.1} parent=1 // pred_check_branch
      %18 = sbr.rel (0) target = $region9
    $region8: #{tpu_custom_call.1} parent=1 // pred_region
      _
    $region9: #{tpu_custom_call.1} parent=1 // pred_fallthru
      _
    // Predicated region
    $region10: #{tpu_custom_call.1} parent=1 // pred_check
      _
    $region11: #{tpu_custom_call.1} parent=1 // pred_check_branch
      %20 = sbr.rel (0) target = $region13
    $region12: #{tpu_custom_call.1} parent=1 // pred_region
      _
    $region13: #{tpu_custom_call.1} parent=1 // pred_fallthru
      _
    // Predicated region
    $region14: #{tpu_custom_call.1} parent=1 // pred_check
      _
    $region15: #{tpu_custom_call.1} parent=1 // pred_check_branch
      %22 = sbr.rel (0) target = $region17
    $region16: #{tpu_custom_call.1} parent=1 // pred_region
      _
    $region17: #{tpu_custom_call.1} parent=1 // pred_fallthru
      _
    // Predicated region
    $region18: #{tpu_custom_call.1} parent=1 // pred_check
      _
    $region19: #{tpu_custom_call.1} parent=1 // pred_check_branch
      %24 = sbr.rel (0) target = $region21
    $region20: #{tpu_custom_call.1} parent=1 // pred_region
      _
    $region21: #{tpu_custom_call.1} parent=1 // pred_fallthru
      _
    // Predicated region
    $region22: #{tpu_custom_call.1} parent=1 // pred_check
      _
    $region23: #{tpu_custom_call.1} parent=1 // pred_check_branch
      %26 = sbr.rel (0) target = $region25
    $region24: #{tpu_custom_call.1} parent=1 // pred_region
      _
    $region25: #{tpu_custom_call.1} parent=1 // pred_fallthru
      _
    // Predicated region
    $region26: #{tpu_custom_call.1} parent=1 // pred_check
      _
    $region27: #{tpu_custom_call.1} parent=1 // pred_check_branch
      %28 = sbr.rel (0) target = $region29
    $region28: #{tpu_custom_call.1} parent=1 // pred_region
      _
    $region29: #{tpu_custom_call.1} parent=1 // pred_fallthru
      _
    %v29 = vld [vmem:[%s0] sm:$0xff]
    %v30 = vld [vmem:[%s0 + $0x8] sm:$0xff]
    %v31 = vld [vmem:[%s0 + $0x10] sm:$0xff]
    %v32 = vld [vmem:[%s0 + $0x18] sm:$0xff]
    %v33 = vld [vmem:[%s0 + $0x20] sm:$0xff]
    %v34 = vld [vmem:[%s0 + $0x28] sm:$0xff]
    %v35 = vld [vmem:[%s0 + $0x30] sm:$0xff]
    %v36 = vld [vmem:[%s0 + $0x38] sm:$0xff]
    %v37 = vld [vmem:[%s0 + $0x40] sm:$0xff]
    %v38 = vld [vmem:[%s0 + $0x48] sm:$0xff]
    %v39 = vld [vmem:[%s0 + $0x50] sm:$0xff]
    %v40 = vld [vmem:[%s0 + $0x58] sm:$0xff]
    %v41 = vld [vmem:[%s0 + $0x60] sm:$0xff]
    %v42 = vld [vmem:[%s0 + $0x68] sm:$0xff]
    %v43 = vld [vmem:[%s0 + $0x70] sm:$0xff]
    %v44 = vld [vmem:[%s0 + $0x78] sm:$0xff]
    %v45 = vld [vmem:[%s1] sm:$0xff]
    %v46 = vld [vmem:[%s1 + $0x8] sm:$0xff]
    %v47 = vld [vmem:[%s1 + $0x10] sm:$0xff]
    %v48 = vld [vmem:[%s1 + $0x18] sm:$0xff]
    %v49 = vld [vmem:[%s1 + $0x20] sm:$0xff]
    %v50 = vld [vmem:[%s1 + $0x28] sm:$0xff]
    %v51 = vld [vmem:[%s1 + $0x30] sm:$0xff]
    %v52 = vld [vmem:[%s2] sm:$0x1]
    %v54 = vlaneseq
    %v55 = vshrl.u32 %v54, 7
    %v56 = vsub.s32 0, %v55
    %v57 = vrot.slane %v52, %v56
    %vm59 = vcmask 457728
    %v61 = vsel %vm59, %v29, 0
    %v64 = vsel %vm59, %v30, 0
    %v67 = vsel %vm59, %v31, 0
    %v70 = vsel %vm59, %v32, 0
    %v73 = vsel %vm59, %v33, 0
    %v76 = vsel %vm59, %v34, 0
    %v79 = vsel %vm59, %v35, 0
    %v82 = vsel %vm59, %v36, 0
    %v85 = vsel %vm59, %v37, 0
    %v88 = vsel %vm59, %v38, 0
    %v91 = vsel %vm59, %v39, 0
    %v94 = vsel %vm59, %v40, 0
    %v97 = vsel %vm59, %v41, 0
    %v100 = vsel %vm59, %v42, 0
    %v103 = vsel %vm59, %v43, 0
    %v106 = vsel %vm59, %v44, 0
    %108 = vmatprep.subr.mxu0 0.0
    %109 = vmatpush1.msra.mxu0 %v45
    %110 = vmatprep.subr.mxu0 0.0
    %111 = vmatpush1.msra.mxu0 %v46
    %112 = vmatprep.subr.mxu0 0.0
    %113 = vmatpush1.msra.mxu0 %v47
    %114 = vmatprep.subr.mxu0 0.0
    %115 = vmatpush1.msra.mxu0 %v48
    %116 = vmatprep.subr.mxu0 0.0
    %117 = vmatpush1.msra.mxu0 %v49
    %118 = vmatprep.subr.mxu0 0.0
    %119 = vmatpush1.msra.mxu0 %v50
    %120 = vmatprep.subr.mxu0 0.0
    %121 = vmatpush1.msra.mxu0 %v51
    %122 = vmatprep.subr.mxu0 0.0
    %123 = vmatpush1.msra.mxu0 0.0
    %124 = vmatprep.subr.mxu0 0.0
    %125 = vmatpush1.msra.mxu0 0.0
    %126 = vmatprep.subr.mxu0 0.0
    %127 = vmatpush1.msra.mxu0 0.0
    %128 = vmatprep.subr.mxu0 0.0
    %129 = vmatpush1.msra.mxu0 0.0
    %130 = vmatprep.subr.mxu0 0.0
    %131 = vmatpush1.msra.mxu0 0.0
    %132 = vmatprep.subr.mxu0 0.0
    %133 = vmatpush1.msra.mxu0 0.0
    %134 = vmatprep.subr.mxu0 0.0
    %135 = vmatpush1.msra.mxu0 0.0
    %136 = vmatprep.subr.mxu0 0.0
    %137 = vmatpush1.msra.mxu0 0.0
    %138 = vmatprep.subr.mxu0 0.0
    %139 = vmatpush1.msra.mxu0 0.0
    %140 = vmatprep.subr.mxu0 0.0
    %141 = vmatpush1.msra.mxu0 0.0
    %142 = vmatprep.subr.mxu0 0.0
    %143 = vmatpush1.msra.mxu0 0.0
    %144 = vmatprep.subr.mxu0 0.0
    %145 = vmatpush1.msra.mxu0 0.0
    %146 = vmatprep.subr.mxu0 0.0
    %147 = vmatpush1.msra.mxu0 0.0
    %148 = vmatprep.subr.mxu0 0.0
    %149 = vmatpush1.msra.mxu0 0.0
    %150 = vmatprep.subr.mxu0 0.0
    %151 = vmatpush1.msra.mxu0 0.0
    %152 = vmatprep.subr.mxu0 0.0
    %153 = vmatpush1.msra.mxu0 0.0
    %154 = vmatprep.subr.mxu0 0.0
    %155 = vmatpush1.msra.mxu0 0.0
    %156 = vmatprep.subr.mxu0 0.0
    %157 = vmatpush1.msra.mxu0 0.0
    %158 = vmatprep.subr.mxu0 0.0
    %159 = vmatpush1.msra.mxu0 0.0
    %160 = vmatprep.subr.mxu0 0.0
    %161 = vmatpush1.msra.mxu0 0.0
    %162 = vmatprep.subr.mxu0 0.0
    %163 = vmatpush1.msra.mxu0 0.0
    %164 = vmatprep.subr.mxu0 0.0
    %165 = vmatpush1.msra.mxu0 0.0
    %166 = vmatprep.subr.mxu0 0.0
    %167 = vmatpush1.msra.mxu0 0.0
    %168 = vmatprep.subr.mxu0 0.0
    %169 = vmatpush1.msra.mxu0 0.0
    %170 = vmatprep.subr.mxu0 0.0
    %171 = vmatpush1.msra.mxu0 0.0
    %172 = vmatprep.mubr.f32.mxu0 0.0
    %173 = vmatmul.mubr.f32.gmra.mrb[0].mxu0 %v61
    %v174 = vpop.f32.mrb[0].mxu0
    %v175 = vadd.f32 %v57, %v174
    %v176 = vpop.f32.mrb[0].mxu0
    %177 = vmatprep.mubr.f32.mxu0 0.0
    %178 = vmatmul.mubr.f32.gmra.mrb[0].mxu0 %v64
    %v179 = vpop.f32.mrb[0].mxu0
    %v180 = vadd.f32 %v57, %v179
    %v181 = vpop.f32.mrb[0].mxu0
    %182 = vmatprep.mubr.f32.mxu0 0.0
    %183 = vmatmul.mubr.f32.gmra.mrb[0].mxu0 %v67
    %v184 = vpop.f32.mrb[0].mxu0
    %v185 = vadd.f32 %v57, %v184
    %v186 = vpop.f32.mrb[0].mxu0
    %187 = vmatprep.mubr.f32.mxu0 0.0
    %188 = vmatmul.mubr.f32.gmra.mrb[0].mxu0 %v70
    %v189 = vpop.f32.mrb[0].mxu0
    %v190 = vadd.f32 %v57, %v189
    %v191 = vpop.f32.mrb[0].mxu0
    %192 = vmatprep.mubr.f32.mxu0 0.0
    %193 = vmatmul.mubr.f32.gmra.mrb[0].mxu0 %v73
    %v194 = vpop.f32.mrb[0].mxu0
    %v195 = vadd.f32 %v57, %v194
    %v196 = vpop.f32.mrb[0].mxu0
    %197 = vmatprep.mubr.f32.mxu0 0.0
    %198 = vmatmul.mubr.f32.gmra.mrb[0].mxu0 %v76
    %v199 = vpop.f32.mrb[0].mxu0
    %v200 = vadd.f32 %v57, %v199
    %v201 = vpop.f32.mrb[0].mxu0
    %202 = vmatprep.mubr.f32.mxu0 0.0
    %203 = vmatmul.mubr.f32.gmra.mrb[0].mxu0 %v79
    %v204 = vpop.f32.mrb[0].mxu0
    %v205 = vadd.f32 %v57, %v204
    %v206 = vpop.f32.mrb[0].mxu0
    %207 = vmatprep.mubr.f32.mxu0 0.0
    %208 = vmatmul.mubr.f32.gmra.mrb[0].mxu0 %v82
    %v209 = vpop.f32.mrb[0].mxu0
    %v210 = vadd.f32 %v57, %v209
    %v211 = vpop.f32.mrb[0].mxu0
    %212 = vmatprep.mubr.f32.mxu0 0.0
    %213 = vmatmul.mubr.f32.gmra.mrb[0].mxu0 %v85
    %v214 = vpop.f32.mrb[0].mxu0
    %v215 = vadd.f32 %v57, %v214
    %v216 = vpop.f32.mrb[0].mxu0
    %217 = vmatprep.mubr.f32.mxu0 0.0
    %218 = vmatmul.mubr.f32.gmra.mrb[0].mxu0 %v88
    %v219 = vpop.f32.mrb[0].mxu0
    %v220 = vadd.f32 %v57, %v219
    %v221 = vpop.f32.mrb[0].mxu0
    %222 = vmatprep.mubr.f32.mxu0 0.0
    %223 = vmatmul.mubr.f32.gmra.mrb[0].mxu0 %v91
    %v224 = vpop.f32.mrb[0].mxu0
    %v225 = vadd.f32 %v57, %v224
    %v226 = vpop.f32.mrb[0].mxu0
    %227 = vmatprep.mubr.f32.mxu0 0.0
    %228 = vmatmul.mubr.f32.gmra.mrb[0].mxu0 %v94
    %v229 = vpop.f32.mrb[0].mxu0
    %v230 = vadd.f32 %v57, %v229
    %v231 = vpop.f32.mrb[0].mxu0
    %232 = vmatprep.mubr.f32.mxu0 0.0
    %233 = vmatmul.mubr.f32.gmra.mrb[0].mxu0 %v97
    %v234 = vpop.f32.mrb[0].mxu0
    %v235 = vadd.f32 %v57, %v234
    %v236 = vpop.f32.mrb[0].mxu0
    %237 = vmatprep.mubr.f32.mxu0 0.0
    %238 = vmatmul.mubr.f32.gmra.mrb[0].mxu0 %v100
    %v239 = vpop.f32.mrb[0].mxu0
    %v240 = vadd.f32 %v57, %v239
    %v241 = vpop.f32.mrb[0].mxu0
    %242 = vmatprep.mubr.f32.mxu0 0.0
    %243 = vmatmul.mubr.f32.gmra.mrb[0].mxu0 %v103
    %v244 = vpop.f32.mrb[0].mxu0
    %v245 = vadd.f32 %v57, %v244
    %v246 = vpop.f32.mrb[0].mxu0
    %247 = vmatprep.mubr.f32.mxu0 0.0
    %248 = vmatmul.mubr.f32.gmra.mrb[0].mxu0 %v106
    %v249 = vpop.f32.mrb[0].mxu0
    %v250 = vadd.f32 %v57, %v249
    %v251 = vpop.f32.mrb[0].mxu0
    %252 = vdwg.mxu0
    %vm253 = vcmp.gt.f32.partialorder %v175, 0.0
    %vm254 = vcmp.gt.f32.partialorder %v180, 0.0
    %vm255 = vcmp.gt.f32.partialorder %v185, 0.0
    %vm256 = vcmp.gt.f32.partialorder %v190, 0.0
    %vm257 = vcmp.gt.f32.partialorder %v195, 0.0
    %vm258 = vcmp.gt.f32.partialorder %v200, 0.0
    %vm259 = vcmp.gt.f32.partialorder %v205, 0.0
    %vm260 = vcmp.gt.f32.partialorder %v210, 0.0
    %vm261 = vcmp.gt.f32.partialorder %v215, 0.0
    %vm262 = vcmp.gt.f32.partialorder %v220, 0.0
    %vm263 = vcmp.gt.f32.partialorder %v225, 0.0
    %vm264 = vcmp.gt.f32.partialorder %v230, 0.0
    %vm265 = vcmp.gt.f32.partialorder %v235, 0.0
    %vm266 = vcmp.gt.f32.partialorder %v240, 0.0
    %vm267 = vcmp.gt.f32.partialorder %v245, 0.0
    %vm268 = vcmp.gt.f32.partialorder %v250, 0.0
    %v269 = vmul.f32 %v175, 0.2
    %v270 = vmul.f32 %v180, 0.2
    %v271 = vmul.f32 %v185, 0.2
    %v272 = vmul.f32 %v190, 0.2
    %v273 = vmul.f32 %v195, 0.2
    %v274 = vmul.f32 %v200, 0.2
    %v275 = vmul.f32 %v205, 0.2
    %v276 = vmul.f32 %v210, 0.2
    %v277 = vmul.f32 %v215, 0.2
    %v278 = vmul.f32 %v220, 0.2
    %v279 = vmul.f32 %v225, 0.2
    %v280 = vmul.f32 %v230, 0.2
    %v281 = vmul.f32 %v235, 0.2
    %v282 = vmul.f32 %v240, 0.2
    %v283 = vmul.f32 %v245, 0.2
    %v284 = vmul.f32 %v250, 0.2
    %v285 = vsel %vm253, %v175, %v269
    %v286 = vsel %vm254, %v180, %v270
    %v287 = vsel %vm255, %v185, %v271
    %v288 = vsel %vm256, %v190, %v272
    %v289 = vsel %vm257, %v195, %v273
    %v290 = vsel %vm258, %v200, %v274
    %v291 = vsel %vm259, %v205, %v275
    %v292 = vsel %vm260, %v210, %v276
    %v293 = vsel %vm261, %v215, %v277
    %v294 = vsel %vm262, %v220, %v278
    %v295 = vsel %vm263, %v225, %v279
    %v296 = vsel %vm264, %v230, %v280
    %v297 = vsel %vm265, %v235, %v281
    %v298 = vsel %vm266, %v240, %v282
    %v299 = vsel %vm267, %v245, %v283
    %v300 = vsel %vm268, %v250, %v284
    %v301 = vld [vmem:[%s3] sm:$0xff]
    %v302 = vld [vmem:[%s3 + $0x8] sm:$0xff]
    %v303 = vld [vmem:[%s3 + $0x10] sm:$0xff]
    %v304 = vld [vmem:[%s3 + $0x18] sm:$0xff]
    %v305 = vld [vmem:[%s4] sm:$0x1]
    %v307 = vlaneseq
    %v308 = vshrl.u32 %v307, 7
    %v309 = vsub.s32 0, %v308
    %v310 = vrot.slane %v305, %v309
    %vm312 = vcmask 261120
    %v314 = vsel %vm312, %v285, 0
    %v317 = vsel %vm312, %v286, 0
    %v320 = vsel %vm312, %v287, 0
    %v323 = vsel %vm312, %v288, 0
    %v326 = vsel %vm312, %v289, 0
    %v329 = vsel %vm312, %v290, 0
    %v332 = vsel %vm312, %v291, 0
    %v335 = vsel %vm312, %v292, 0
    %v338 = vsel %vm312, %v293, 0
    %v341 = vsel %vm312, %v294, 0
    %v344 = vsel %vm312, %v295, 0
    %v347 = vsel %vm312, %v296, 0
    %v350 = vsel %vm312, %v297, 0
    %v353 = vsel %vm312, %v298, 0
    %v356 = vsel %vm312, %v299, 0
    %v359 = vsel %vm312, %v300, 0
    %361 = vmatprep.subr.mxu0 0.0
    %362 = vmatpush1.msra.mxu0 %v301
    %363 = vmatprep.subr.mxu0 0.0
    %364 = vmatpush1.msra.mxu0 %v302
    %365 = vmatprep.subr.mxu0 0.0
    %366 = vmatpush1.msra.mxu0 %v303
    %367 = vmatprep.subr.mxu0 0.0
    %368 = vmatpush1.msra.mxu0 %v304
    %369 = vmatprep.subr.mxu0 0.0
    %370 = vmatpush1.msra.mxu0 0.0
    %371 = vmatprep.subr.mxu0 0.0
    %372 = vmatpush1.msra.mxu0 0.0
    %373 = vmatprep.subr.mxu0 0.0
    %374 = vmatpush1.msra.mxu0 0.0
    %375 = vmatprep.subr.mxu0 0.0
    %376 = vmatpush1.msra.mxu0 0.0
    %377 = vmatprep.subr.mxu0 0.0
    %378 = vmatpush1.msra.mxu0 0.0
    %379 = vmatprep.subr.mxu0 0.0
    %380 = vmatpush1.msra.mxu0 0.0
    %381 = vmatprep.subr.mxu0 0.0
    %382 = vmatpush1.msra.mxu0 0.0
    %383 = vmatprep.subr.mxu0 0.0
    %384 = vmatpush1.msra.mxu0 0.0
    %385 = vmatprep.subr.mxu0 0.0
    %386 = vmatpush1.msra.mxu0 0.0
    %387 = vmatprep.subr.mxu0 0.0
    %388 = vmatpush1.msra.mxu0 0.0
    %389 = vmatprep.subr.mxu0 0.0
    %390 = vmatpush1.msra.mxu0 0.0
    %391 = vmatprep.subr.mxu0 0.0
    %392 = vmatpush1.msra.mxu0 0.0
    %393 = vmatprep.subr.mxu0 0.0
    %394 = vmatpush1.msra.mxu0 0.0
    %395 = vmatprep.subr.mxu0 0.0
    %396 = vmatpush1.msra.mxu0 0.0
    %397 = vmatprep.subr.mxu0 0.0
    %398 = vmatpush1.msra.mxu0 0.0
    %399 = vmatprep.subr.mxu0 0.0
    %400 = vmatpush1.msra.mxu0 0.0
    %401 = vmatprep.subr.mxu0 0.0
    %402 = vmatpush1.msra.mxu0 0.0
    %403 = vmatprep.subr.mxu0 0.0
    %404 = vmatpush1.msra.mxu0 0.0
    %405 = vmatprep.subr.mxu0 0.0
    %406 = vmatpush1.msra.mxu0 0.0
    %407 = vmatprep.subr.mxu0 0.0
    %408 = vmatpush1.msra.mxu0 0.0
    %409 = vmatprep.subr.mxu0 0.0
    %410 = vmatpush1.msra.mxu0 0.0
    %411 = vmatprep.subr.mxu0 0.0
    %412 = vmatpush1.msra.mxu0 0.0
    %413 = vmatprep.subr.mxu0 0.0
    %414 = vmatpush1.msra.mxu0 0.0
    %415 = vmatprep.subr.mxu0 0.0
    %416 = vmatpush1.msra.mxu0 0.0
    %417 = vmatprep.subr.mxu0 0.0
    %418 = vmatpush1.msra.mxu0 0.0
    %419 = vmatprep.subr.mxu0 0.0
    %420 = vmatpush1.msra.mxu0 0.0
    %421 = vmatprep.subr.mxu0 0.0
    %422 = vmatpush1.msra.mxu0 0.0
    %423 = vmatprep.subr.mxu0 0.0
    %424 = vmatpush1.msra.mxu0 0.0
    %425 = vmatprep.mubr.f32.mxu0 0.0
    %426 = vmatmul.mubr.f32.gmra.mrb[0].mxu0 %v314
    %v427 = vpop.f32.mrb[0].mxu0
    %v428 = vadd.f32 %v310, %v427
    %v429 = vpop.f32.mrb[0].mxu0
    %430 = vmatprep.mubr.f32.mxu0 0.0
    %431 = vmatmul.mubr.f32.gmra.mrb[0].mxu0 %v317
    %v432 = vpop.f32.mrb[0].mxu0
    %v433 = vadd.f32 %v310, %v432
    %v434 = vpop.f32.mrb[0].mxu0
    %435 = vmatprep.mubr.f32.mxu0 0.0
    %436 = vmatmul.mubr.f32.gmra.mrb[0].mxu0 %v320
    %v437 = vpop.f32.mrb[0].mxu0
    %v438 = vadd.f32 %v310, %v437
    %v439 = vpop.f32.mrb[0].mxu0
    %440 = vmatprep.mubr.f32.mxu0 0.0
    %441 = vmatmul.mubr.f32.gmra.mrb[0].mxu0 %v323
    %v442 = vpop.f32.mrb[0].mxu0
    %v443 = vadd.f32 %v310, %v442
    %v444 = vpop.f32.mrb[0].mxu0
    %445 = vmatprep.mubr.f32.mxu0 0.0
    %446 = vmatmul.mubr.f32.gmra.mrb[0].mxu0 %v326
    %v447 = vpop.f32.mrb[0].mxu0
    %v448 = vadd.f32 %v310, %v447
    %v449 = vpop.f32.mrb[0].mxu0
    %450 = vmatprep.mubr.f32.mxu0 0.0
    %451 = vmatmul.mubr.f32.gmra.mrb[0].mxu0 %v329
    %v452 = vpop.f32.mrb[0].mxu0
    %v453 = vadd.f32 %v310, %v452
    %v454 = vpop.f32.mrb[0].mxu0
    %455 = vmatprep.mubr.f32.mxu0 0.0
    %456 = vmatmul.mubr.f32.gmra.mrb[0].mxu0 %v332
    %v457 = vpop.f32.mrb[0].mxu0
    %v458 = vadd.f32 %v310, %v457
    %v459 = vpop.f32.mrb[0].mxu0
    %460 = vmatprep.mubr.f32.mxu0 0.0
    %461 = vmatmul.mubr.f32.gmra.mrb[0].mxu0 %v335
    %v462 = vpop.f32.mrb[0].mxu0
    %v463 = vadd.f32 %v310, %v462
    %v464 = vpop.f32.mrb[0].mxu0
    %465 = vmatprep.mubr.f32.mxu0 0.0
    %466 = vmatmul.mubr.f32.gmra.mrb[0].mxu0 %v338
    %v467 = vpop.f32.mrb[0].mxu0
    %v468 = vadd.f32 %v310, %v467
    %v469 = vpop.f32.mrb[0].mxu0
    %470 = vmatprep.mubr.f32.mxu0 0.0
    %471 = vmatmul.mubr.f32.gmra.mrb[0].mxu0 %v341
    %v472 = vpop.f32.mrb[0].mxu0
    %v473 = vadd.f32 %v310, %v472
    %v474 = vpop.f32.mrb[0].mxu0
    %475 = vmatprep.mubr.f32.mxu0 0.0
    %476 = vmatmul.mubr.f32.gmra.mrb[0].mxu0 %v344
    %v477 = vpop.f32.mrb[0].mxu0
    %v478 = vadd.f32 %v310, %v477
    %v479 = vpop.f32.mrb[0].mxu0
    %480 = vmatprep.mubr.f32.mxu0 0.0
    %481 = vmatmul.mubr.f32.gmra.mrb[0].mxu0 %v347
    %v482 = vpop.f32.mrb[0].mxu0
    %v483 = vadd.f32 %v310, %v482
    %v484 = vpop.f32.mrb[0].mxu0
    %485 = vmatprep.mubr.f32.mxu0 0.0
    %486 = vmatmul.mubr.f32.gmra.mrb[0].mxu0 %v350
    %v487 = vpop.f32.mrb[0].mxu0
    %v488 = vadd.f32 %v310, %v487
    %v489 = vpop.f32.mrb[0].mxu0
    %490 = vmatprep.mubr.f32.mxu0 0.0
    %491 = vmatmul.mubr.f32.gmra.mrb[0].mxu0 %v353
    %v492 = vpop.f32.mrb[0].mxu0
    %v493 = vadd.f32 %v310, %v492
    %v494 = vpop.f32.mrb[0].mxu0
    %495 = vmatprep.mubr.f32.mxu0 0.0
    %496 = vmatmul.mubr.f32.gmra.mrb[0].mxu0 %v356
    %v497 = vpop.f32.mrb[0].mxu0
    %v498 = vadd.f32 %v310, %v497
    %v499 = vpop.f32.mrb[0].mxu0
    %500 = vmatprep.mubr.f32.mxu0 0.0
    %501 = vmatmul.mubr.f32.gmra.mrb[0].mxu0 %v359
    %v502 = vpop.f32.mrb[0].mxu0
    %v503 = vadd.f32 %v310, %v502
    %v504 = vpop.f32.mrb[0].mxu0
    %505 = vdwg.mxu0
    %vm506 = vcmp.gt.f32.partialorder %v428, 0.0
    %vm507 = vcmp.gt.f32.partialorder %v433, 0.0
    %vm508 = vcmp.gt.f32.partialorder %v438, 0.0
    %vm509 = vcmp.gt.f32.partialorder %v443, 0.0
    %vm510 = vcmp.gt.f32.partialorder %v448, 0.0
    %vm511 = vcmp.gt.f32.partialorder %v453, 0.0
    %vm512 = vcmp.gt.f32.partialorder %v458, 0.0
    %vm513 = vcmp.gt.f32.partialorder %v463, 0.0
    %vm514 = vcmp.gt.f32.partialorder %v468, 0.0
    %vm515 = vcmp.gt.f32.partialorder %v473, 0.0
    %vm516 = vcmp.gt.f32.partialorder %v478, 0.0
    %vm517 = vcmp.gt.f32.partialorder %v483, 0.0
    %vm518 = vcmp.gt.f32.partialorder %v488, 0.0
    %vm519 = vcmp.gt.f32.partialorder %v493, 0.0
    %vm520 = vcmp.gt.f32.partialorder %v498, 0.0
    %vm521 = vcmp.gt.f32.partialorder %v503, 0.0
    %v522 = vmul.f32 %v428, 0.2
    %v523 = vmul.f32 %v433, 0.2
    %v524 = vmul.f32 %v438, 0.2
    %v525 = vmul.f32 %v443, 0.2
    %v526 = vmul.f32 %v448, 0.2
    %v527 = vmul.f32 %v453, 0.2
    %v528 = vmul.f32 %v458, 0.2
    %v529 = vmul.f32 %v463, 0.2
    %v530 = vmul.f32 %v468, 0.2
    %v531 = vmul.f32 %v473, 0.2
    %v532 = vmul.f32 %v478, 0.2
    %v533 = vmul.f32 %v483, 0.2
    %v534 = vmul.f32 %v488, 0.2
    %v535 = vmul.f32 %v493, 0.2
    %v536 = vmul.f32 %v498, 0.2
    %v537 = vmul.f32 %v503, 0.2
    %v538 = vsel %vm506, %v428, %v522
    %v539 = vsel %vm507, %v433, %v523
    %v540 = vsel %vm508, %v438, %v524
    %v541 = vsel %vm509, %v443, %v525
    %v542 = vsel %vm510, %v448, %v526
    %v543 = vsel %vm511, %v453, %v527
    %v544 = vsel %vm512, %v458, %v528
    %v545 = vsel %vm513, %v463, %v529
    %v546 = vsel %vm514, %v468, %v530
    %v547 = vsel %vm515, %v473, %v531
    %v548 = vsel %vm516, %v478, %v532
    %v549 = vsel %vm517, %v483, %v533
    %v550 = vsel %vm518, %v488, %v534
    %v551 = vsel %vm519, %v493, %v535
    %v552 = vsel %vm520, %v498, %v536
    %v553 = vsel %vm521, %v503, %v537
    %v554 = vld [vmem:[%s5] sm:$0x1]
    %v555 = vld [vmem:[#allocation2] sm:$0x1]
    %557 = vset.pattern.permute.xlu0 0
    %558 = vperm.xlu0 %557, %v555
    %v559 = vpop.permute.xlu0 %558
    %v561 = vlaneseq
    %v562 = vshrl.u32 %v561, 7
    %v563 = vsub.s32 0, %v562
    %v564 = vrot.slane %v559, %v563
    %vm565 = vcmask 130048
    %v567 = vsel %vm565, %v554, 0
    %v570 = vsel %vm565, %v538, 0
    %v573 = vsel %vm565, %v539, 0
    %v576 = vsel %vm565, %v540, 0
    %v579 = vsel %vm565, %v541, 0
    %v582 = vsel %vm565, %v542, 0
    %v585 = vsel %vm565, %v543, 0
    %v588 = vsel %vm565, %v544, 0
    %v591 = vsel %vm565, %v545, 0
    %v594 = vsel %vm565, %v546, 0
    %v597 = vsel %vm565, %v547, 0
    %v600 = vsel %vm565, %v548, 0
    %v603 = vsel %vm565, %v549, 0
    %v606 = vsel %vm565, %v550, 0
    %v609 = vsel %vm565, %v551, 0
    %v612 = vsel %vm565, %v552, 0
    %v615 = vsel %vm565, %v553, 0
    %617 = vmatprep.subr.mxu0 0.0
    %618 = vmatpush1.xpose.msra.mxu0 %v570
    %619 = vmatprep.subr.mxu0 0.0
    %620 = vmatpush1.xpose.msra.mxu0 %v573
    %621 = vmatprep.subr.mxu0 0.0
    %622 = vmatpush1.xpose.msra.mxu0 %v576
    %623 = vmatprep.subr.mxu0 0.0
    %624 = vmatpush1.xpose.msra.mxu0 %v579
    %625 = vmatprep.subr.mxu0 0.0
    %626 = vmatpush1.xpose.msra.mxu0 %v582
    %627 = vmatprep.subr.mxu0 0.0
    %628 = vmatpush1.xpose.msra.mxu0 %v585
    %629 = vmatprep.subr.mxu0 0.0
    %630 = vmatpush1.xpose.msra.mxu0 %v588
    %631 = vmatprep.subr.mxu0 0.0
    %632 = vmatpush1.xpose.msra.mxu0 %v591
    %633 = vmatprep.subr.mxu0 0.0
    %634 = vmatpush1.xpose.msra.mxu0 %v594
    %635 = vmatprep.subr.mxu0 0.0
    %636 = vmatpush1.xpose.msra.mxu0 %v597
    %637 = vmatprep.subr.mxu0 0.0
    %638 = vmatpush1.xpose.msra.mxu0 %v600
    %639 = vmatprep.subr.mxu0 0.0
    %640 = vmatpush1.xpose.msra.mxu0 %v603
    %641 = vmatprep.subr.mxu0 0.0
    %642 = vmatpush1.xpose.msra.mxu0 %v606
    %643 = vmatprep.subr.mxu0 0.0
    %644 = vmatpush1.xpose.msra.mxu0 %v609
    %645 = vmatprep.subr.mxu0 0.0
    %646 = vmatpush1.xpose.msra.mxu0 %v612
    %647 = vmatprep.subr.mxu0 0.0
    %648 = vmatpush1.xpose.msra.mxu0 %v615
    %649 = vmatprep.subr.mxu0 0.0
    %650 = vmatpush1.xpose.msra.mxu0 0.0
    %651 = vmatprep.subr.mxu0 0.0
    %652 = vmatpush1.xpose.msra.mxu0 0.0
    %653 = vmatprep.subr.mxu0 0.0
    %654 = vmatpush1.xpose.msra.mxu0 0.0
    %655 = vmatprep.subr.mxu0 0.0
    %656 = vmatpush1.xpose.msra.mxu0 0.0
    %657 = vmatprep.subr.mxu0 0.0
    %658 = vmatpush1.xpose.msra.mxu0 0.0
    %659 = vmatprep.subr.mxu0 0.0
    %660 = vmatpush1.xpose.msra.mxu0 0.0
    %661 = vmatprep.subr.mxu0 0.0
    %662 = vmatpush1.xpose.msra.mxu0 0.0
    %663 = vmatprep.subr.mxu0 0.0
    %664 = vmatpush1.xpose.msra.mxu0 0.0
    %665 = vmatprep.subr.mxu0 0.0
    %666 = vmatpush1.xpose.msra.mxu0 0.0
    %667 = vmatprep.subr.mxu0 0.0
    %668 = vmatpush1.xpose.msra.mxu0 0.0
    %669 = vmatprep.subr.mxu0 0.0
    %670 = vmatpush1.xpose.msra.mxu0 0.0
    %671 = vmatprep.subr.mxu0 0.0
    %672 = vmatpush1.xpose.msra.mxu0 0.0
    %673 = vmatprep.subr.mxu0 0.0
    %674 = vmatpush1.xpose.msra.mxu0 0.0
    %675 = vmatprep.subr.mxu0 0.0
    %676 = vmatpush1.xpose.msra.mxu0 0.0
    %677 = vmatprep.subr.mxu0 0.0
    %678 = vmatpush1.xpose.msra.mxu0 0.0
    %679 = vmatprep.subr.mxu0 0.0
    %680 = vmatpush1.xpose.msra.mxu0 0.0
    %681 = vmatprep.mubr.f32.mxu0 0.0
    %682 = vmatmul.mubr.f32.gmra.mrb[0].mxu0 %v567
    %v683 = vpop.f32.mrb[0].mxu0
    %v684 = vadd.f32 %v564, %v683
    %v685 = vpop.f32.mrb[0].mxu0
    %686 = vdwg.mxu0
    %687 = vst [vmem:[#allocation3] sm:$0x1] %v684
    // Predicated region
    $region30: #{tpu_custom_call.1} parent=1 // pred_check
      _
    $region31: #{tpu_custom_call.1} parent=1 // pred_check_branch
      %689 = sbr.rel (0) target = $region33
    $region32: #{tpu_custom_call.1} parent=1 // pred_region
      %s691 = ssub.s32 16, 16
      %692 = vsyncadd [#allocation4], %s691
      %s694 = sshll.u32 [#allocation3], 4
      %s695 = int_to_ptr.vmem [resolvable:$true] %s694
      %697 = dma.vmem_to_hbm [thread:$0]  %s695, 16, %s7, [#allocation4]
    $region33: #{tpu_custom_call.1} parent=1 // pred_fallthru
      _
    // Predicated region
    $region34: #{tpu_custom_call.1} parent=1 // pred_check
      _
    $region35: #{tpu_custom_call.1} parent=1 // pred_check_branch
      %699 = sbr.rel (0) target = $region37
    $region36: #{tpu_custom_call.1} parent=1 // pred_region
      %700 = dma.done [#allocation4], 16
    $region37: #{tpu_custom_call.1} parent=1 // pred_fallthru
      _
    %701 = vsyncpa [#allocation4], 1

</llo_original>
